<compile_context>
chip_gen: v7x
topology: tpu7x:2x2x1
jax: 0.10.0
libtpu: 0.0.40
codegen_flags: <defaults>
</compile_context>

<pallas_src>
import functools

import jax
import jax.numpy as jnp
from jax import lax
from jax.experimental import pallas as pl
from jax.experimental.pallas import tpu as pltpu


def _round_up(x, m):
    return ((x + m - 1) // m) * m


def ffn_kernel(x_ref, gamma_ref, beta_ref, w_ref, b_ref, o_ref, *,
               eps, compute_dtype):
    # x_ref:     (tm, D)   tile of flattened (B*T, D) input (padded rows = 0)
    # gamma_ref: (1, D)    LayerNorm scale (f32)
    # beta_ref:  (1, D)    LayerNorm shift (f32)
    # w_ref:     (D, tn)   linear weight tile, already in compute_dtype (bf16)
    # b_ref:     (1, tn)   linear bias tile (f32)
    # o_ref:     (tm, tn)  output tile
    x = x_ref[...].astype(jnp.float32)

    # LayerNorm over the last axis (biased variance, like torch.nn.LayerNorm).
    # Kept in f32 (no bf16 VPU/EUP on v5e; numerically safer everywhere).
    mean = jnp.mean(x, axis=-1, keepdims=True)
    centered = x - mean
    var = jnp.mean(centered * centered, axis=-1, keepdims=True)
    xn = centered * lax.rsqrt(var + eps)
    y = xn * gamma_ref[...] + beta_ref[...]

    # Linear projection on the MXU: bf16 inputs, f32 accumulation.
    h = jnp.dot(y.astype(compute_dtype), w_ref[...],
                preferred_element_type=jnp.float32)
    h = h + b_ref[...]

    # Swish activation: h * sigmoid(h) (sigmoid goes to the EUP slot).
    o_ref[...] = (h * jax.nn.sigmoid(h)).astype(o_ref.dtype)
    # TODO(synk): nn.Dropout(p=0.1) omitted (inference-mode identity);
    # training-mode dropout would use pltpu.prng_seed / prng_random_bits.


def feed_forward_module(inputs, gamma, beta, weight, bias, *,
                        eps=1e-5, tm=256, tn=512,
                        compute_dtype=jnp.bfloat16):
    """inputs: (B, T, D) -> outputs: (B, T, H), H = weight.shape[1].

    weight is stored (D, H) (transposed vs torch's (H, D))."""
    B, T, D = inputs.shape
    H = weight.shape[1]
    M = B * T

    # Row tile: multiple of 8 sublanes, capped by the (rounded-up) row count.
    tm_eff = min(tm, _round_up(M, 8))
    M_pad = _round_up(M, tm_eff)

    # Hidden tile: lane-dense; fall back to full H if it doesn't divide evenly.
    tn_eff = min(tn, H)
    if H % tn_eff != 0:
        tn_eff = H

    x2d = inputs.reshape(M, D)
    if M_pad != M:
        # Zero-pad rows; padded rows produce garbage-free finite values and
        # are sliced off before returning (never included in the output).
        x2d = jnp.pad(x2d, ((0, M_pad - M), (0, 0)))

    gamma2d = gamma.reshape(1, D).astype(jnp.float32)
    beta2d = beta.reshape(1, D).astype(jnp.float32)
    w_c = weight.astype(compute_dtype)          # bf16 weight -> half the DMA
    bias2d = bias.reshape(1, H).astype(jnp.float32)

    grid = (M_pad // tm_eff, H // tn_eff)

    # Size the scoped VMEM budget to the actual double-buffered tiles.
    in_bytes = jnp.dtype(inputs.dtype).itemsize
    c_bytes = jnp.dtype(compute_dtype).itemsize
    tile_bytes = (tm_eff * D * in_bytes          # x tile
                  + D * tn_eff * c_bytes         # weight tile
                  + tm_eff * tn_eff * in_bytes   # output tile
                  + tn_eff * 4                   # bias tile
                  + 2 * D * 4)                   # gamma + beta
    vmem_limit = int(min(max(2 * tile_bytes + (8 << 20), 32 << 20), 100 << 20))

    out2d = pl.pallas_call(
        functools.partial(ffn_kernel, eps=eps, compute_dtype=compute_dtype),
        out_shape=jax.ShapeDtypeStruct((M_pad, H), inputs.dtype),
        grid_spec=pltpu.PrefetchScalarGridSpec(
            num_scalar_prefetch=0,
            grid=grid,
            in_specs=[
                pl.BlockSpec((tm_eff, D), lambda i, j: (i, 0)),   # x rows
                pl.BlockSpec((1, D), lambda i, j: (0, 0)),        # gamma
                pl.BlockSpec((1, D), lambda i, j: (0, 0)),        # beta
                pl.BlockSpec((D, tn_eff), lambda i, j: (0, j)),   # weight
                pl.BlockSpec((1, tn_eff), lambda i, j: (0, j)),   # bias
            ],
            out_specs=pl.BlockSpec((tm_eff, tn_eff), lambda i, j: (i, j)),
        ),
        compiler_params=pltpu.CompilerParams(
            dimension_semantics=("parallel", "parallel"),
            vmem_limit_bytes=vmem_limit),
    )(x2d, gamma2d, beta2d, w_c, bias2d)

    return out2d[:M].reshape(B, T, H)


def init_params(key, encoder_dim, expansion_factor):
    hidden = int(encoder_dim * expansion_factor)
    # LayerNorm: gamma = 1, beta = 0
    gamma = jnp.ones((encoder_dim,), jnp.float32)
    beta = jnp.zeros((encoder_dim,), jnp.float32)
    # Linear: xavier_uniform_ on the torch (out, in) weight; stored as (in, out)
    bound = (6.0 / (encoder_dim + hidden)) ** 0.5
    w = jax.random.uniform(key, (encoder_dim, hidden), jnp.float32,
                           minval=-bound, maxval=bound)
    # nn.init.constant_(bias, 0.0)
    b = jnp.zeros((hidden,), jnp.float32)
    return gamma, beta, w, b


if __name__ == "__main__":
    # Small but lane-dense demo config (D multiple of 128, H = 4*D).
    encoder_dim = 128
    expansion_factor = 4
    batch, time = 2, 8

    key = jax.random.PRNGKey(0)
    k_x, k_w = jax.random.split(key)

    x = jax.random.normal(k_x, (batch, time, encoder_dim), jnp.float32)
    gamma, beta, w, b = init_params(k_w, encoder_dim, expansion_factor)

    out = feed_forward_module(x, gamma, beta, w, b)
    out = jax.block_until_ready(out)

    # Pure-JAX reference with the same dtype recipe (f32 LN, bf16 matmul
    # inputs, f32 accumulation).
    x32 = x.astype(jnp.float32)
    mean = x32.mean(-1, keepdims=True)
    var = ((x32 - mean) ** 2).mean(-1, keepdims=True)
    xn = (x32 - mean) * lax.rsqrt(var + 1e-5)
    y = xn * gamma + beta
    h = jnp.dot(y.astype(jnp.bfloat16), w.astype(jnp.bfloat16),
                preferred_element_type=jnp.float32) + b
    ref = h * jax.nn.sigmoid(h)

    assert out.shape == (batch, time, int(encoder_dim * expansion_factor))
    assert jnp.allclose(out, ref, atol=1e-2, rtol=1e-2), \
        float(jnp.max(jnp.abs(out - ref)))

    print("KERNEL_OK")
</pallas_src>

<mosaic_0001>
module attributes {stable_mosaic.version = 11 : i64} {
  func.func @ffn_kernel(%arg0: i32, %arg1: i32, %arg2: memref<16x128xf32, #tpu.memory_space<vmem>>, %arg3: memref<1x128xf32, #tpu.memory_space<vmem>>, %arg4: memref<1x128xf32, #tpu.memory_space<vmem>>, %arg5: memref<128x512xbf16, #tpu.memory_space<vmem>>, %arg6: memref<1x512xf32, #tpu.memory_space<vmem>>, %arg7: memref<16x512xf32, #tpu.memory_space<vmem>>) attributes {dimension_semantics = [#tpu.dimension_semantics<parallel>, #tpu.dimension_semantics<parallel>], iteration_bounds = array<i64: 1, 1>, scalar_prefetch = 0 : i64, scratch_operands = 0 : i64, tpu.core_type = #tpu.core_type<tc>, window_params = [{transform_indices = @transform_0, window_bounds = array<i64: 16, 128>}, {pipeline_mode = #tpu.pipeline_mode<synchronous>, transform_indices = @transform_1, window_bounds = array<i64: 1, 128>}, {pipeline_mode = #tpu.pipeline_mode<synchronous>, transform_indices = @transform_2, window_bounds = array<i64: 1, 128>}, {transform_indices = @transform_3, window_bounds = array<i64: 128, 512>}, {transform_indices = @transform_4, window_bounds = array<i64: 1, 512>}, {transform_indices = @transform_5, window_bounds = array<i64: 16, 512>}]} {
    %c0 = arith.constant 0 : index
    %c0_0 = arith.constant 0 : index
    %0 = vector.load %arg2[%c0, %c0_0] : memref<16x128xf32, #tpu.memory_space<vmem>>, vector<16x128xf32>
    %cst = arith.constant dense<0.000000e+00> : vector<16xf32>
    %1 = vector.multi_reduction <add>, %0, %cst [1] : vector<16x128xf32> to vector<16xf32>
    %2 = vector.shape_cast %1 : vector<16xf32> to vector<16x1xf32>
    %cst_1 = arith.constant 1.280000e+02 : f32
    %3 = vector.broadcast %cst_1 : f32 to vector<16x1xf32>
    %4 = arith.divf %2, %3 : vector<16x1xf32>
    %5 = vector.broadcast %4 : vector<16x1xf32> to vector<16x128xf32>
    %6 = arith.subf %0, %5 : vector<16x128xf32>
    %7 = arith.mulf %6, %6 : vector<16x128xf32>
    %cst_2 = arith.constant dense<0.000000e+00> : vector<16xf32>
    %8 = vector.multi_reduction <add>, %7, %cst_2 [1] : vector<16x128xf32> to vector<16xf32>
    %9 = vector.shape_cast %8 : vector<16xf32> to vector<16x1xf32>
    %cst_3 = arith.constant 1.280000e+02 : f32
    %10 = vector.broadcast %cst_3 : f32 to vector<16x1xf32>
    %11 = arith.divf %9, %10 : vector<16x1xf32>
    %cst_4 = arith.constant 9.99999974E-6 : f32
    %12 = vector.broadcast %cst_4 : f32 to vector<16x1xf32>
    %13 = arith.addf %11, %12 : vector<16x1xf32>
    %14 = math.rsqrt %13 : vector<16x1xf32>
    %15 = vector.broadcast %14 : vector<16x1xf32> to vector<16x128xf32>
    %16 = arith.mulf %6, %15 : vector<16x128xf32>
    %c0_5 = arith.constant 0 : index
    %c0_6 = arith.constant 0 : index
    %17 = vector.load %arg3[%c0_5, %c0_6] : memref<1x128xf32, #tpu.memory_space<vmem>>, vector<1x128xf32>
    %18 = vector.broadcast %17 : vector<1x128xf32> to vector<16x128xf32>
    %19 = arith.mulf %16, %18 : vector<16x128xf32>
    %c0_7 = arith.constant 0 : index
    %c0_8 = arith.constant 0 : index
    %20 = vector.load %arg4[%c0_7, %c0_8] : memref<1x128xf32, #tpu.memory_space<vmem>>, vector<1x128xf32>
    %21 = vector.broadcast %20 : vector<1x128xf32> to vector<16x128xf32>
    %22 = arith.addf %19, %21 : vector<16x128xf32>
    %23 = arith.truncf %22 : vector<16x128xf32> to vector<16x128xbf16>
    %c0_9 = arith.constant 0 : index
    %c0_10 = arith.constant 0 : index
    %24 = vector.load %arg5[%c0_9, %c0_10] : memref<128x512xbf16, #tpu.memory_space<vmem>>, vector<128x512xbf16>
    %cst_11 = arith.constant dense<0.000000e+00> : vector<16x512xf32>
    %25 = tpu.matmul %23, %24, %cst_11 {dimension_numbers = #tpu.dot_dimension_numbers<[1], [0], [0], [1], [0, 0, 1, 1], [], []>} : vector<16x128xbf16>, vector<128x512xbf16>, vector<16x512xf32> -> vector<16x512xf32>
    %c0_12 = arith.constant 0 : index
    %c0_13 = arith.constant 0 : index
    %26 = vector.load %arg6[%c0_12, %c0_13] : memref<1x512xf32, #tpu.memory_space<vmem>>, vector<1x512xf32>
    %27 = vector.broadcast %26 : vector<1x512xf32> to vector<16x512xf32>
    %28 = arith.addf %25, %27 : vector<16x512xf32>
    %29 = arith.negf %28 : vector<16x512xf32>
    %30 = math.exp %29 : vector<16x512xf32>
    %cst_14 = arith.constant 1.000000e+00 : f32
    %31 = vector.broadcast %cst_14 : f32 to vector<16x512xf32>
    %32 = arith.addf %31, %30 : vector<16x512xf32>
    %33 = arith.divf %31, %32 : vector<16x512xf32>
    %34 = arith.mulf %28, %33 : vector<16x512xf32>
    %c0_15 = arith.constant 0 : index
    %c0_16 = arith.constant 0 : index
    %35 = vector.load %arg7[%c0_15, %c0_16] : memref<16x512xf32, #tpu.memory_space<vmem>>, vector<16x512xf32>
    tpu.vector_store %arg7[%c0_15, %c0_16], %34 {strides = array<i32>} : memref<16x512xf32, #tpu.memory_space<vmem>>, vector<16x512xf32>,
    return
  }
  func.func @transform_0(%arg0: i32, %arg1: i32) -> (i32, i32) {
    %c0_i32 = arith.constant 0 : i32
    %c0_i32_0 = arith.constant 0 : i32
    return %arg0, %c0_i32 : i32, i32
  }
  func.func @transform_1(%arg0: i32, %arg1: i32) -> (i32, i32) {
    %c0_i32 = arith.constant 0 : i32
    %c0_i32_0 = arith.constant 0 : i32
    %c0_i32_1 = arith.constant 0 : i32
    return %c0_i32, %c0_i32_0 : i32, i32
  }
  func.func @transform_2(%arg0: i32, %arg1: i32) -> (i32, i32) {
    %c0_i32 = arith.constant 0 : i32
    %c0_i32_0 = arith.constant 0 : i32
    %c0_i32_1 = arith.constant 0 : i32
    return %c0_i32, %c0_i32_0 : i32, i32
  }
  func.func @transform_3(%arg0: i32, %arg1: i32) -> (i32, i32) {
    %c0_i32 = arith.constant 0 : i32
    %c0_i32_0 = arith.constant 0 : i32
    return %c0_i32, %arg1 : i32, i32
  }
  func.func @transform_4(%arg0: i32, %arg1: i32) -> (i32, i32) {
    %c0_i32 = arith.constant 0 : i32
    %c0_i32_0 = arith.constant 0 : i32
    return %c0_i32, %arg1 : i32, i32
  }
  func.func @transform_5(%arg0: i32, %arg1: i32) -> (i32, i32) {
    %c0_i32 = arith.constant 0 : i32
    return %arg0, %arg1 : i32, i32
  }
}

</mosaic_0001>

<llo_original>
// kernel: tpu_custom_call.1
$region0: #{tpu_custom_call.1}
  #allocation0 [shape = 'u32[]', space=smem, size = 0x4, offset = 0x4, fixed_abs, tag = 'smem constant byte address 0x4 - core index']
  #allocation1 [shape = 'u32[144,128]{1,0:T(1,128)}', space=vmem, size = 0x12000, scoped, tag = 'internal scratch']
  %s0 = inlined_call_operand.hbm [shape: f32[16,128], index: 0, kind: input, shape index: {}]
  %s1 = inlined_call_operand.vmem [shape: f32[1,128], index: 1, kind: input, shape index: {}]
  %s2 = inlined_call_operand.vmem [shape: f32[1,128], index: 2, kind: input, shape index: {}]
  %s3 = inlined_call_operand.hbm [shape: bf16[128,512], index: 3, kind: input, shape index: {}]
  %s4 = inlined_call_operand.vmem [shape: f32[1,512], index: 4, kind: input, shape index: {}]
  %s5 = inlined_call_operand.hbm [shape: f32[16,512], index: 5, kind: output, shape index: {}]
  %s6 = sld [smem:[#allocation0]]
  $region38: #{tpu_custom_call.1} parent=0
    _
  %s8 = ssub.s32 1, %s6
  %s9 = scalar_select 0, %s8, %s6
  $region1: #{tpu_custom_call.1} parent=0
    #allocation2 [shape = 'u8[8192]{0}', space=vmem, size = 0x2000, scoped, tag = 'input window, operand 0, single buffered']
    #allocation3 [shape = 's32[1]{0}', space=sflag, size = 0x4, scoped, tag = 'scoped memory for tpu_custom_call.1']
    #allocation4 [shape = 's32[1]{0}', space=sflag, size = 0x4, scoped, tag = 'scoped memory for tpu_custom_call.1']
    #allocation5 [shape = 'u8[131072]{0}', space=vmem, size = 0x20000, scoped, tag = 'input window, operand 3, single buffered']
    #allocation6 [shape = 's32[1]{0}', space=sflag, size = 0x4, scoped, tag = 'scoped memory for tpu_custom_call.1']
    #allocation7 [shape = 'u8[32768]{0}', space=vmem, size = 0x8000, scoped, tag = 'output window, operand 0, single buffered']
    %10 = vsyncpa [#allocation3], 0
    %11 = vsyncpa [#allocation6], 0
    %12 = vsyncpa [#allocation4], 0
    // Predicated region
    $region2: #{tpu_custom_call.1} parent=1 // pred_check
      _
    $region3: #{tpu_custom_call.1} parent=1 // pred_check_branch
      %14 = sbr.rel (0) target = $region5
    $region4: #{tpu_custom_call.1} parent=1 // pred_region
      %s16 = ssub.s32 256, 256
      %17 = vsyncadd [#allocation3], %s16
      %s18 = sshll.u32 [#allocation2], 4
      %s19 = int_to_ptr.vmem [resolvable:$true] %s18
      %24 = dma.hbm_to_vmem [thread:$0]  %s0, 256, %s19, [#allocation3], 128, 128, 8
    $region5: #{tpu_custom_call.1} parent=1 // pred_fallthru
      _
    // Predicated region
    $region6: #{tpu_custom_call.1} parent=1 // pred_check
      _
    $region7: #{tpu_custom_call.1} parent=1 // pred_check_branch
      %26 = sbr.rel (0) target = $region9
    $region8: #{tpu_custom_call.1} parent=1 // pred_region
      _
    $region9: #{tpu_custom_call.1} parent=1 // pred_fallthru
      _
    // Predicated region
    $region10: #{tpu_custom_call.1} parent=1 // pred_check
      _
    $region11: #{tpu_custom_call.1} parent=1 // pred_check_branch
      %28 = sbr.rel (0) target = $region13
    $region12: #{tpu_custom_call.1} parent=1 // pred_region
      _
    $region13: #{tpu_custom_call.1} parent=1 // pred_fallthru
      _
    // Predicated region
    $region14: #{tpu_custom_call.1} parent=1 // pred_check
      _
    $region15: #{tpu_custom_call.1} parent=1 // pred_check_branch
      %30 = sbr.rel (0) target = $region17
    $region16: #{tpu_custom_call.1} parent=1 // pred_region
      %s32 = ssub.s32 4096, 4096
      %33 = vsyncadd [#allocation6], %s32
      %s34 = sshll.u32 [#allocation5], 4
      %s35 = int_to_ptr.vmem [resolvable:$true] %s34
      %40 = dma.hbm_to_vmem [thread:$0]  %s3, 4096, %s35, [#allocation6], 256, 256, 16
    $region17: #{tpu_custom_call.1} parent=1 // pred_fallthru
      _
    // Predicated region
    $region18: #{tpu_custom_call.1} parent=1 // pred_check
      _
    $region19: #{tpu_custom_call.1} parent=1 // pred_check_branch
      %42 = sbr.rel (0) target = $region21
    $region20: #{tpu_custom_call.1} parent=1 // pred_region
      _
    $region21: #{tpu_custom_call.1} parent=1 // pred_fallthru
      _
    // Predicated region
    $region22: #{tpu_custom_call.1} parent=1 // pred_check
      _
    $region23: #{tpu_custom_call.1} parent=1 // pred_check_branch
      %44 = sbr.rel (0) target = $region25
    $region24: #{tpu_custom_call.1} parent=1 // pred_region
      %45 = dma.done [#allocation3], 256
    $region25: #{tpu_custom_call.1} parent=1 // pred_fallthru
      _
    // Predicated region
    $region26: #{tpu_custom_call.1} parent=1 // pred_check
      _
    $region27: #{tpu_custom_call.1} parent=1 // pred_check_branch
      %47 = sbr.rel (0) target = $region29
    $region28: #{tpu_custom_call.1} parent=1 // pred_region
      %48 = dma.done [#allocation6], 4096
    $region29: #{tpu_custom_call.1} parent=1 // pred_fallthru
      _
    %v50 = vld [vmem:[#allocation2] sm:$0xff]
    %v51 = vld [vmem:[#allocation2 + $0x8] sm:$0xff]
    %52 = vadd.xlane.f32.xlu0 %v50
    %v53 = vpop.xlane.xlu0 %52
    %54 = vadd.xlane.f32.xlu0 %v51
    %v55 = vpop.xlane.xlu0 %54
    %v56 = vrcp.pop 128.0
    %v57 = vmul.f32 %v53, %v56
    %v58 = vmul.f32 %v55, %v56
    %v59 = vsub.f32 %v50, %v57
    %v60 = vsub.f32 %v51, %v58
    %v61 = vmul.f32 %v59, %v59
    %v62 = vmul.f32 %v60, %v60
    %63 = vadd.xlane.f32.xlu0 %v61
    %v64 = vpop.xlane.xlu0 %63
    %65 = vadd.xlane.f32.xlu0 %v62
    %v66 = vpop.xlane.xlu0 %65
    %v67 = vmul.f32 %v64, %v56
    %v68 = vmul.f32 %v66, %v56
    %v69 = vadd.f32 %v67, 1e-05
    %v70 = vadd.f32 %v68, 1e-05
    %v71 = vrsqrt.pop %v69
    %v72 = vrsqrt.pop %v70
    %v73 = vmul.f32 %v59, %v71
    %v74 = vmul.f32 %v60, %v72
    %v75 = vld [vmem:[%s1] sm:$0x1]
    %v77 = vlaneseq
    %v78 = vshrl.u32 %v77, 7
    %v79 = vsub.s32 0, %v78
    %v80 = vrot.slane %v75, %v79
    %v82 = vmul.f32 %v73, %v80
    %v83 = vmul.f32 %v74, %v80
    %v84 = vld [vmem:[%s2] sm:$0x1]
    %v86 = vlaneseq
    %v87 = vshrl.u32 %v86, 7
    %v88 = vsub.s32 0, %v87
    %v89 = vrot.slane %v84, %v88
    %v91 = vadd.f32 %v82, %v89
    %v92 = vadd.f32 %v83, %v89
    %v93 = vpack.c.bf16 %v92, %v91
    %v94 = vld [vmem:[#allocation5] sm:$0xff]
    %v95 = vld [vmem:[#allocation5 + $0x8] sm:$0xff]
    %v96 = vld [vmem:[#allocation5 + $0x10] sm:$0xff]
    %v97 = vld [vmem:[#allocation5 + $0x18] sm:$0xff]
    %v98 = vld [vmem:[#allocation5 + $0x20] sm:$0xff]
    %v99 = vld [vmem:[#allocation5 + $0x28] sm:$0xff]
    %v100 = vld [vmem:[#allocation5 + $0x30] sm:$0xff]
    %v101 = vld [vmem:[#allocation5 + $0x38] sm:$0xff]
    %v102 = vld [vmem:[#allocation5 + $0x40] sm:$0xff]
    %v103 = vld [vmem:[#allocation5 + $0x48] sm:$0xff]
    %v104 = vld [vmem:[#allocation5 + $0x50] sm:$0xff]
    %v105 = vld [vmem:[#allocation5 + $0x58] sm:$0xff]
    %v106 = vld [vmem:[#allocation5 + $0x60] sm:$0xff]
    %v107 = vld [vmem:[#allocation5 + $0x68] sm:$0xff]
    %v108 = vld [vmem:[#allocation5 + $0x70] sm:$0xff]
    %v109 = vld [vmem:[#allocation5 + $0x78] sm:$0xff]
    %v110 = vld [vmem:[#allocation5 + $0x80] sm:$0xff]
    %v111 = vld [vmem:[#allocation5 + $0x88] sm:$0xff]
    %v112 = vld [vmem:[#allocation5 + $0x90] sm:$0xff]
    %v113 = vld [vmem:[#allocation5 + $0x98] sm:$0xff]
    %v114 = vld [vmem:[#allocation5 + $0xa0] sm:$0xff]
    %v115 = vld [vmem:[#allocation5 + $0xa8] sm:$0xff]
    %v116 = vld [vmem:[#allocation5 + $0xb0] sm:$0xff]
    %v117 = vld [vmem:[#allocation5 + $0xb8] sm:$0xff]
    %v118 = vld [vmem:[#allocation5 + $0xc0] sm:$0xff]
    %v119 = vld [vmem:[#allocation5 + $0xc8] sm:$0xff]
    %v120 = vld [vmem:[#allocation5 + $0xd0] sm:$0xff]
    %v121 = vld [vmem:[#allocation5 + $0xd8] sm:$0xff]
    %v122 = vld [vmem:[#allocation5 + $0xe0] sm:$0xff]
    %v123 = vld [vmem:[#allocation5 + $0xe8] sm:$0xff]
    %v124 = vld [vmem:[#allocation5 + $0xf0] sm:$0xff]
    %v125 = vld [vmem:[#allocation5 + $0xf8] sm:$0xff]
    %v126 = vld [vmem:[%s4] sm:$0xf]
    %v128 = vlaneseq
    %v129 = vshrl.u32 %v128, 7
    %v130 = vsub.s32 0, %v129
    %v131 = vrot.slane %v126, %v130
    %v132 = vlaneseq
    %v133 = vshrl.u32 %v132, 7
    %v134 = vsub.s32 1, %v133
    %v135 = vrot.slane %v126, %v134
    %v136 = vlaneseq
    %v137 = vshrl.u32 %v136, 7
    %v138 = vsub.s32 2, %v137
    %v139 = vrot.slane %v126, %v138
    %v140 = vlaneseq
    %v141 = vshrl.u32 %v140, 7
    %v142 = vsub.s32 3, %v141
    %v143 = vrot.slane %v126, %v142
    %v180 = vunpack.c.l.b16 %v94
    %v181 = vunpack.c.h.b16 %v94
    %v182 = vunpack.c.l.b16 %v95
    %v183 = vunpack.c.h.b16 %v95
    %v184 = vunpack.c.l.b16 %v96
    %v185 = vunpack.c.h.b16 %v96
    %v186 = vunpack.c.l.b16 %v97
    %v187 = vunpack.c.h.b16 %v97
    %v188 = vunpack.c.l.b16 %v98
    %v189 = vunpack.c.h.b16 %v98
    %v190 = vunpack.c.l.b16 %v99
    %v191 = vunpack.c.h.b16 %v99
    %v192 = vunpack.c.l.b16 %v100
    %v193 = vunpack.c.h.b16 %v100
    %v194 = vunpack.c.l.b16 %v101
    %v195 = vunpack.c.h.b16 %v101
    %v196 = vunpack.c.l.b16 %v102
    %v197 = vunpack.c.h.b16 %v102
    %v198 = vunpack.c.l.b16 %v103
    %v199 = vunpack.c.h.b16 %v103
    %v200 = vunpack.c.l.b16 %v104
    %v201 = vunpack.c.h.b16 %v104
    %v202 = vunpack.c.l.b16 %v105
    %v203 = vunpack.c.h.b16 %v105
    %v204 = vunpack.c.l.b16 %v106
    %v205 = vunpack.c.h.b16 %v106
    %v206 = vunpack.c.l.b16 %v107
    %v207 = vunpack.c.h.b16 %v107
    %v208 = vunpack.c.l.b16 %v108
    %v209 = vunpack.c.h.b16 %v108
    %v210 = vunpack.c.l.b16 %v109
    %v211 = vunpack.c.h.b16 %v109
    %v212 = vunpack.c.l.b16 %v110
    %v213 = vunpack.c.h.b16 %v110
    %v214 = vunpack.c.l.b16 %v111
    %v215 = vunpack.c.h.b16 %v111
    %v216 = vunpack.c.l.b16 %v112
    %v217 = vunpack.c.h.b16 %v112
    %v218 = vunpack.c.l.b16 %v113
    %v219 = vunpack.c.h.b16 %v113
    %v220 = vunpack.c.l.b16 %v114
    %v221 = vunpack.c.h.b16 %v114
    %v222 = vunpack.c.l.b16 %v115
    %v223 = vunpack.c.h.b16 %v115
    %v224 = vunpack.c.l.b16 %v116
    %v225 = vunpack.c.h.b16 %v116
    %v226 = vunpack.c.l.b16 %v117
    %v227 = vunpack.c.h.b16 %v117
    %v228 = vunpack.c.l.b16 %v118
    %v229 = vunpack.c.h.b16 %v118
    %v230 = vunpack.c.l.b16 %v119
    %v231 = vunpack.c.h.b16 %v119
    %v232 = vunpack.c.l.b16 %v120
    %v233 = vunpack.c.h.b16 %v120
    %v234 = vunpack.c.l.b16 %v121
    %v235 = vunpack.c.h.b16 %v121
    %v236 = vunpack.c.l.b16 %v122
    %v237 = vunpack.c.h.b16 %v122
    %v238 = vunpack.c.l.b16 %v123
    %v239 = vunpack.c.h.b16 %v123
    %v240 = vunpack.c.l.b16 %v124
    %v241 = vunpack.c.h.b16 %v124
    %v242 = vunpack.c.l.b16 %v125
    %v243 = vunpack.c.h.b16 %v125
    %v244 = vpack.c.b16 %v184, %v180
    %v245 = vpack.c.b16 %v185, %v181
    %v246 = vpack.c.b16 %v186, %v182
    %v247 = vpack.c.b16 %v187, %v183
    %v248 = vpack.c.b16 %v192, %v188
    %v249 = vpack.c.b16 %v193, %v189
    %v250 = vpack.c.b16 %v194, %v190
    %v251 = vpack.c.b16 %v195, %v191
    %v252 = vpack.c.b16 %v200, %v196
    %v253 = vpack.c.b16 %v201, %v197
    %v254 = vpack.c.b16 %v202, %v198
    %v255 = vpack.c.b16 %v203, %v199
    %v256 = vpack.c.b16 %v208, %v204
    %v257 = vpack.c.b16 %v209, %v205
    %v258 = vpack.c.b16 %v210, %v206
    %v259 = vpack.c.b16 %v211, %v207
    %v260 = vpack.c.b16 %v216, %v212
    %v261 = vpack.c.b16 %v217, %v213
    %v262 = vpack.c.b16 %v218, %v214
    %v263 = vpack.c.b16 %v219, %v215
    %v264 = vpack.c.b16 %v224, %v220
    %v265 = vpack.c.b16 %v225, %v221
    %v266 = vpack.c.b16 %v226, %v222
    %v267 = vpack.c.b16 %v227, %v223
    %v268 = vpack.c.b16 %v232, %v228
    %v269 = vpack.c.b16 %v233, %v229
    %v270 = vpack.c.b16 %v234, %v230
    %v271 = vpack.c.b16 %v235, %v231
    %v272 = vpack.c.b16 %v240, %v236
    %v273 = vpack.c.b16 %v241, %v237
    %v274 = vpack.c.b16 %v242, %v238
    %v275 = vpack.c.b16 %v243, %v239
    %308 = vmatprep.subr.bf16.mxu0 %v245
    %309 = vmatpush1.bf16.msra.mxu0 %v244
    %310 = vmatprep.subr.bf16.mxu0 %v249
    %311 = vmatpush1.bf16.msra.mxu0 %v248
    %312 = vmatprep.subr.bf16.mxu0 %v253
    %313 = vmatpush1.bf16.msra.mxu0 %v252
    %314 = vmatprep.subr.bf16.mxu0 %v257
    %315 = vmatpush1.bf16.msra.mxu0 %v256
    %316 = vmatprep.subr.bf16.mxu0 %v261
    %317 = vmatpush1.bf16.msra.mxu0 %v260
    %318 = vmatprep.subr.bf16.mxu0 %v265
    %319 = vmatpush1.bf16.msra.mxu0 %v264
    %320 = vmatprep.subr.bf16.mxu0 %v269
    %321 = vmatpush1.bf16.msra.mxu0 %v268
    %322 = vmatprep.subr.bf16.mxu0 %v273
    %323 = vmatpush1.bf16.msra.mxu0 %v272
    %324 = vmatprep.subr.bf16.mxu0 0
    %325 = vmatpush1.bf16.msra.mxu0 0
    %326 = vmatprep.subr.bf16.mxu0 0
    %327 = vmatpush1.bf16.msra.mxu0 0
    %328 = vmatprep.subr.bf16.mxu0 0
    %329 = vmatpush1.bf16.msra.mxu0 0
    %330 = vmatprep.subr.bf16.mxu0 0
    %331 = vmatpush1.bf16.msra.mxu0 0
    %332 = vmatprep.subr.bf16.mxu0 0
    %333 = vmatpush1.bf16.msra.mxu0 0
    %334 = vmatprep.subr.bf16.mxu0 0
    %335 = vmatpush1.bf16.msra.mxu0 0
    %336 = vmatprep.subr.bf16.mxu0 0
    %337 = vmatpush1.bf16.msra.mxu0 0
    %338 = vmatprep.subr.bf16.mxu0 0
    %339 = vmatpush1.bf16.msra.mxu0 0
    %340 = vmatprep.mubr.bf16.mxu0 0
    %341 = vmatmul.mubr.bf16.gmra.mrb[0].mxu0 %v93
    %v342 = vpop.f32.mrb[0].mxu0
    %v343 = vadd.f32 %v131, %v342
    %v344 = vpop.f32.mrb[0].mxu0
    %v345 = vadd.f32 %v135, %v344
    %v346 = vpop.f32.mrb[0].mxu0
    %v347 = vadd.f32 %v131, %v346
    %v348 = vpop.f32.mrb[0].mxu0
    %v349 = vadd.f32 %v135, %v348
    %350 = vdwg.mxu0
    %351 = vmatprep.subr.bf16.mxu0 %v247
    %352 = vmatpush1.bf16.msra.mxu0 %v246
    %353 = vmatprep.subr.bf16.mxu0 %v251
    %354 = vmatpush1.bf16.msra.mxu0 %v250
    %355 = vmatprep.subr.bf16.mxu0 %v255
    %356 = vmatpush1.bf16.msra.mxu0 %v254
    %357 = vmatprep.subr.bf16.mxu0 %v259
    %358 = vmatpush1.bf16.msra.mxu0 %v258
    %359 = vmatprep.subr.bf16.mxu0 %v263
    %360 = vmatpush1.bf16.msra.mxu0 %v262
    %361 = vmatprep.subr.bf16.mxu0 %v267
    %362 = vmatpush1.bf16.msra.mxu0 %v266
    %363 = vmatprep.subr.bf16.mxu0 %v271
    %364 = vmatpush1.bf16.msra.mxu0 %v270
    %365 = vmatprep.subr.bf16.mxu0 %v275
    %366 = vmatpush1.bf16.msra.mxu0 %v274
    %367 = vmatprep.subr.bf16.mxu0 0
    %368 = vmatpush1.bf16.msra.mxu0 0
    %369 = vmatprep.subr.bf16.mxu0 0
    %370 = vmatpush1.bf16.msra.mxu0 0
    %371 = vmatprep.subr.bf16.mxu0 0
    %372 = vmatpush1.bf16.msra.mxu0 0
    %373 = vmatprep.subr.bf16.mxu0 0
    %374 = vmatpush1.bf16.msra.mxu0 0
    %375 = vmatprep.subr.bf16.mxu0 0
    %376 = vmatpush1.bf16.msra.mxu0 0
    %377 = vmatprep.subr.bf16.mxu0 0
    %378 = vmatpush1.bf16.msra.mxu0 0
    %379 = vmatprep.subr.bf16.mxu0 0
    %380 = vmatpush1.bf16.msra.mxu0 0
    %381 = vmatprep.subr.bf16.mxu0 0
    %382 = vmatpush1.bf16.msra.mxu0 0
    %383 = vmatprep.mubr.bf16.mxu0 0
    %384 = vmatmul.mubr.bf16.gmra.mrb[0].mxu0 %v93
    %v385 = vpop.f32.mrb[0].mxu0
    %v386 = vadd.f32 %v139, %v385
    %v387 = vpop.f32.mrb[0].mxu0
    %v388 = vadd.f32 %v143, %v387
    %v389 = vpop.f32.mrb[0].mxu0
    %v390 = vadd.f32 %v139, %v389
    %v391 = vpop.f32.mrb[0].mxu0
    %v392 = vadd.f32 %v143, %v391
    %393 = vdwg.mxu0
    %v394 = vxor.u32 %v343, 2147483648
    %v395 = vxor.u32 %v345, 2147483648
    %v396 = vxor.u32 %v386, 2147483648
    %v397 = vxor.u32 %v388, 2147483648
    %v398 = vxor.u32 %v347, 2147483648
    %v399 = vxor.u32 %v349, 2147483648
    %v400 = vxor.u32 %v390, 2147483648
    %v401 = vxor.u32 %v392, 2147483648
    %v402 = vmul.f32 %v394, 1.442695
    %v403 = vpow.pop %v402
    %v404 = vmul.f32 %v395, 1.442695
    %v405 = vpow.pop %v404
    %v406 = vmul.f32 %v396, 1.442695
    %v407 = vpow.pop %v406
    %v408 = vmul.f32 %v397, 1.442695
    %v409 = vpow.pop %v408
    %v410 = vmul.f32 %v398, 1.442695
    %v411 = vpow.pop %v410
    %v412 = vmul.f32 %v399, 1.442695
    %v413 = vpow.pop %v412
    %v414 = vmul.f32 %v400, 1.442695
    %v415 = vpow.pop %v414
    %v416 = vmul.f32 %v401, 1.442695
    %v417 = vpow.pop %v416
    %v418 = vadd.f32 %v403, 1.0
    %v419 = vadd.f32 %v405, 1.0
    %v420 = vadd.f32 %v407, 1.0
    %v421 = vadd.f32 %v409, 1.0
    %v422 = vadd.f32 %v411, 1.0
    %v423 = vadd.f32 %v413, 1.0
    %v424 = vadd.f32 %v415, 1.0
    %v425 = vadd.f32 %v417, 1.0
    %v426 = vrcp.pop %v418
    %v427 = vmul.f32 1.0, %v426
    %v428 = vrcp.pop %v419
    %v429 = vmul.f32 1.0, %v428
    %v430 = vrcp.pop %v420
    %v431 = vmul.f32 1.0, %v430
    %v432 = vrcp.pop %v421
    %v433 = vmul.f32 1.0, %v432
    %v434 = vrcp.pop %v422
    %v435 = vmul.f32 1.0, %v434
    %v436 = vrcp.pop %v423
    %v437 = vmul.f32 1.0, %v436
    %v438 = vrcp.pop %v424
    %v439 = vmul.f32 1.0, %v438
    %v440 = vrcp.pop %v425
    %v441 = vmul.f32 1.0, %v440
    %v442 = vmul.f32 %v343, %v427
    %v443 = vmul.f32 %v345, %v429
    %v444 = vmul.f32 %v386, %v431
    %v445 = vmul.f32 %v388, %v433
    %v446 = vmul.f32 %v347, %v435
    %v447 = vmul.f32 %v349, %v437
    %v448 = vmul.f32 %v390, %v439
    %v449 = vmul.f32 %v392, %v441
    %450 = vst [vmem:[#allocation7] sm:$0xff] %v442
    %451 = vst [vmem:[#allocation7 + $0x8] sm:$0xff] %v443
    %452 = vst [vmem:[#allocation7 + $0x10] sm:$0xff] %v444
    %453 = vst [vmem:[#allocation7 + $0x18] sm:$0xff] %v445
    %454 = vst [vmem:[#allocation7 + $0x20] sm:$0xff] %v446
    %455 = vst [vmem:[#allocation7 + $0x28] sm:$0xff] %v447
    %456 = vst [vmem:[#allocation7 + $0x30] sm:$0xff] %v448
    %457 = vst [vmem:[#allocation7 + $0x38] sm:$0xff] %v449
    // Predicated region
    $region30: #{tpu_custom_call.1} parent=1 // pred_check
      _
    $region31: #{tpu_custom_call.1} parent=1 // pred_check_branch
      %459 = sbr.rel (0) target = $region33
    $region32: #{tpu_custom_call.1} parent=1 // pred_region
      %s461 = ssub.s32 1024, 1024
      %462 = vsyncadd [#allocation4], %s461
      %s463 = sshll.u32 [#allocation7], 4
      %s464 = int_to_ptr.vmem [resolvable:$true] %s463
      %469 = dma.vmem_to_hbm [thread:$0]  %s464, 1024, %s5, [#allocation4], 512, 512, 32
    $region33: #{tpu_custom_call.1} parent=1 // pred_fallthru
      _
    // Predicated region
    $region34: #{tpu_custom_call.1} parent=1 // pred_check
      _
    $region35: #{tpu_custom_call.1} parent=1 // pred_check_branch
      %471 = sbr.rel (0) target = $region37
    $region36: #{tpu_custom_call.1} parent=1 // pred_region
      %472 = dma.done [#allocation4], 1024
    $region37: #{tpu_custom_call.1} parent=1 // pred_fallthru
      _
    %473 = vsyncpa [#allocation3], 1
    %474 = vsyncpa [#allocation6], 1
    %475 = vsyncpa [#allocation4], 1

</llo_original>
